<compile_context>
chip_gen: v5e
topology: v5e:2x2
jax: 0.10.0
libtpu: 0.0.40
codegen_flags: <defaults>
</compile_context>

<pallas_src>
import functools
import warnings

import numpy as np
import jax
import jax.numpy as jnp
from jax import lax
from jax.experimental import pallas as pl
from jax.experimental.pallas import tpu as pltpu

_MIB = 1024 * 1024


def _vmem_capacity_bytes():
    try:
        return int(pltpu.get_tpu_info().vmem_capacity_bytes)
    except Exception:
        return 64 * _MIB  # conservative (v7x per-TC) fallback


def _vmem_limit(requested_bytes):
    # Path selection guarantees requested < capacity; never "clip to fit".
    return int(min(max(int(requested_bytes), 32 * _MIB), _vmem_capacity_bytes()))


def _has_int8_mxu():
    # int8 MXU path exists on v5e / v6e; v7x replaces the int path with fp8.
    try:
        kind = jax.devices()[0].device_kind.lower()
    except Exception:
        return False
    return ("v5" in kind) or ("v6" in kind)


# --------------------------------------------------------------------------
# Kernel 1a: row L2-normalization of X (once), emitted directly in bf16 so the
# Gram matmul gets bf16 operands (half the slab DMA + single-pass MXU).
# --------------------------------------------------------------------------
def _rownorm_kernel(x_ref, xn_ref):
    x = x_ref[...]
    inv = lax.rsqrt(jnp.maximum(jnp.sum(x * x, axis=1, keepdims=True), 1e-24))
    xn_ref[...] = (x * inv).astype(xn_ref.dtype)


def l2_normalize_rows(X):
    N, d = X.shape
    tb = N if N <= 1024 else 1024
    vmem = 2 * tb * d * (4 + 2) + 4 * _MIB
    return pl.pallas_call(
        _rownorm_kernel,
        out_shape=jax.ShapeDtypeStruct((N, d), jnp.bfloat16),
        grid=(pl.cdiv(N, tb),),
        in_specs=[pl.BlockSpec((tb, d), lambda i: (i, 0))],
        out_specs=pl.BlockSpec((tb, d), lambda i: (i, 0)),
        compiler_params=pltpu.CompilerParams(
            dimension_semantics=("parallel",),
            vmem_limit_bytes=_vmem_limit(vmem),
        ),
    )(X.astype(jnp.float32))


# --------------------------------------------------------------------------
# Kernel 1b: tiled cosine-similarity Gram matrix  G = Xn @ Xn^T  (bf16 in/out).
# The column operand is pre-transposed once by XLA so the kernel is a plain
# last-dim contraction (no per-tile transpose competing for the MXU slots).
# --------------------------------------------------------------------------
def _gram_kernel(xr_ref, xct_ref, g_ref):
    g_ref[...] = jnp.dot(
        xr_ref[...], xct_ref[...], preferred_element_type=jnp.float32
    ).astype(g_ref.dtype)


def cosine_similarity_matrix(X, tm=1024, tn=512):
    # TODO(synk): fuse a running per-row top-(k+1) into this kernel so the full
    # N x N similarity matrix never hits HBM at very large N.
    Xn = l2_normalize_rows(X)            # (N, d) bf16
    XnT = jnp.transpose(Xn)              # (d, N) bf16, materialized once by XLA
    N, d = Xn.shape
    tm = min(tm, N)
    tn = min(tn, N)
    cap = _vmem_capacity_bytes()

    def need(tm_, tn_):
        # double-buffered bf16 slabs + double-buffered bf16 output tile
        return 2 * (tm_ * d * 2) + 2 * (d * tn_ * 2) + 2 * (tm_ * tn_ * 2) + 8 * _MIB

    while tm > 256 and need(tm, tn) > 0.45 * cap:
        tm //= 2

    return pl.pallas_call(
        _gram_kernel,
        out_shape=jax.ShapeDtypeStruct((N, N), jnp.bfloat16),
        grid=(pl.cdiv(N, tm), pl.cdiv(N, tn)),
        in_specs=[
            pl.BlockSpec((tm, d), lambda i, j: (i, 0)),
            pl.BlockSpec((d, tn), lambda i, j: (0, j)),
        ],
        out_specs=pl.BlockSpec((tm, tn), lambda i, j: (i, j)),
        compiler_params=pltpu.CompilerParams(
            dimension_semantics=("parallel", "parallel"),
            vmem_limit_bytes=_vmem_limit(need(tm, tn)),
        ),
    )(Xn, XnT)


# --------------------------------------------------------------------------
# Kernel 2: label propagation.  Solve (I - W') f_c = y_c for all classes at
# once with CG (fixed max_iter), where W' = alpha * D^{-1/2} W D^{-1/2} is
# pre-folded on the host.  Epilogue: clip / L1-normalize / softmax.
# --------------------------------------------------------------------------
def _lp_epilogue(Z, num_classes):
    NP, CP = Z.shape
    col = lax.broadcasted_iota(jnp.int32, (NP, CP), 1)
    valid = col < num_classes
    Z = jnp.where(valid, jnp.maximum(Z, 0.0), 0.0)
    l1 = jnp.maximum(jnp.sum(Z, axis=1, keepdims=True), 1e-12)
    probs = Z / l1                                      # exact division
    logits = jnp.where(valid, probs, -jnp.inf)          # mask padded lanes
    m = jnp.max(logits, axis=1, keepdims=True)
    e = jnp.exp(logits - m)
    return e / jnp.sum(e, axis=1, keepdims=True)        # exact division


def _lp_resident_kernel(w_ref, y_ref, scale_ref, out_ref, *,
                        max_iter, num_classes, use_int8):
    W = w_ref[...]              # (NP, NP) int8 (with row scale) or bf16
    Y = y_ref[...]              # (NP, CP) f32 seeds, classes zero-padded
    row_scale = scale_ref[...]  # (NP, 1) f32 dequant scale (ones for bf16)

    def matvec(p):
        if use_int8:
            col_max = jnp.maximum(
                jnp.max(jnp.abs(p), axis=0, keepdims=True), 1e-30)   # (1, CP)
            ps = col_max * (1.0 / 127.0)
            q = jnp.clip(jnp.round(p * (127.0 / col_max)), -127.0, 127.0)
            q = q.astype(jnp.int32).astype(jnp.int8)
            acc = jnp.dot(W, q, preferred_element_type=jnp.int32)
            return acc.astype(jnp.float32) * row_scale * ps
        return jnp.dot(W, p.astype(jnp.bfloat16),
                       preferred_element_type=jnp.float32)

    x0 = jnp.zeros_like(Y)
    rs0 = jnp.sum(Y * Y, axis=0, keepdims=True)         # (1, CP)

    # TODO(synk): scipy cg's tol=1e-6 early stop is not replicated; fixed iters.
    def body(_, carry):
        x, r, p, rs = carry
        Ap = p - matvec(p)
        pAp = jnp.sum(p * Ap, axis=0, keepdims=True)
        a = jnp.where(pAp != 0.0, rs / pAp, 0.0)
        x = x + a * p
        r_new = r - a * Ap
        rs_new = jnp.sum(r_new * r_new, axis=0, keepdims=True)
        beta = jnp.where(rs != 0.0, rs_new / rs, 0.0)
        p = r_new + beta * p
        return x, r_new, p, rs_new

    Z, _, _, _ = lax.fori_loop(0, max_iter, body, (x0, Y, Y, rs0))
    out_ref[...] = _lp_epilogue(Z, num_classes)


def _lp_stream_kernel(w_ref, y_ref, out_ref,
                      x_s, r_s, p_s, pbf_s, ap_s, rs_s, pap_s,
                      *, num_classes, block_rows):
    """grid = (max_iter, n_row_blocks).  W' row blocks are re-streamed from HBM
    by the BlockSpec pipeline each CG iteration; CG state stays in VMEM."""
    it = pl.program_id(0)
    blk = pl.program_id(1)
    n_it = pl.num_programs(0)
    n_blk = pl.num_programs(1)

    @pl.when(jnp.logical_and(it == 0, blk == 0))
    def _():
        y = y_ref[...]
        x_s[...] = jnp.zeros_like(x_s)
        r_s[...] = y
        p_s[...] = y
        rs_s[...] = jnp.sum(y * y, axis=0, keepdims=True)

    @pl.when(blk == 0)
    def _():
        pbf_s[...] = p_s[...].astype(jnp.bfloat16)
        pap_s[...] = jnp.zeros_like(pap_s)

    start = pl.multiple_of(blk * block_rows, block_rows)
    rows = pl.ds(start, block_rows)
    p_blk = p_s[rows, :]
    wp = jnp.dot(w_ref[...], pbf_s[...], preferred_element_type=jnp.float32)
    ap_blk = p_blk - wp
    ap_s[rows, :] = ap_blk
    pap_s[...] += jnp.sum(p_blk * ap_blk, axis=0, keepdims=True)

    @pl.when(blk == n_blk - 1)
    def _():
        rs = rs_s[...]
        pap = pap_s[...]
        a = jnp.where(pap != 0.0, rs / pap, 0.0)
        x_s[...] = x_s[...] + a * p_s[...]
        r_new = r_s[...] - a * ap_s[...]
        rs_new = jnp.sum(r_new * r_new, axis=0, keepdims=True)
        beta = jnp.where(rs != 0.0, rs_new / rs, 0.0)
        r_s[...] = r_new
        p_s[...] = r_new + beta * p_s[...]
        rs_s[...] = rs_new

    @pl.when(jnp.logical_and(it == n_it - 1, blk == n_blk - 1))
    def _():
        out_ref[...] = _lp_epilogue(x_s[...], num_classes)


def label_propagate(W_op, Y_pad, row_scale, max_iter, num_classes, *,
                    use_int8, streaming, block_rows=512):
    NP, CP = Y_pad.shape
    if not streaming:
        kern = functools.partial(
            _lp_resident_kernel, max_iter=int(max_iter),
            num_classes=int(num_classes), use_int8=bool(use_int8))
        w_bytes = int(np.prod(W_op.shape)) * W_op.dtype.itemsize
        vmem = w_bytes + 16 * NP * CP * 4 + 2 * NP * 4 + 8 * _MIB
        return pl.pallas_call(
            kern,
            out_shape=jax.ShapeDtypeStruct((NP, CP), jnp.float32),
            in_specs=[pl.BlockSpec(memory_space=pltpu.MemorySpace.VMEM)] * 3,
            out_specs=pl.BlockSpec(memory_space=pltpu.MemorySpace.VMEM),
            compiler_params=pltpu.CompilerParams(
                vmem_limit_bytes=_vmem_limit(vmem)),
        )(W_op, Y_pad, row_scale)

    # Streaming path: W' (bf16) re-streamed from HBM every CG iteration.
    # TODO(synk): int8/fp8 streamed operands and splitting row blocks across
    # the two v7x TensorCores (core_map) are not implemented yet.
    assert NP % block_rows == 0
    n_blk = NP // block_rows
    kern = functools.partial(_lp_stream_kernel, num_classes=int(num_classes),
                             block_rows=int(block_rows))
    vmem = (2 * block_rows * NP * 2          # double-buffered W row blocks
            + 2 * 2 * NP * CP * 4            # y + out buffers
            + 4 * NP * CP * 4 + NP * CP * 2  # x/r/p/Ap f32 + bf16 p scratch
            + 8 * _MIB)
    return pl.pallas_call(
        kern,
        out_shape=jax.ShapeDtypeStruct((NP, CP), jnp.float32),
        grid=(int(max_iter), n_blk),
        in_specs=[
            pl.BlockSpec((block_rows, NP), lambda it, blk: (blk, 0)),
            pl.BlockSpec((NP, CP), lambda it, blk: (0, 0)),
        ],
        out_specs=pl.BlockSpec((NP, CP), lambda it, blk: (0, 0)),
        scratch_shapes=[
            pltpu.VMEM((NP, CP), jnp.float32),   # x
            pltpu.VMEM((NP, CP), jnp.float32),   # r
            pltpu.VMEM((NP, CP), jnp.float32),   # p
            pltpu.VMEM((NP, CP), jnp.bfloat16),  # p cast for the MXU
            pltpu.VMEM((NP, CP), jnp.float32),   # Ap
            pltpu.VMEM((1, CP), jnp.float32),    # r.r
            pltpu.VMEM((1, CP), jnp.float32),    # p.Ap
        ],
        compiler_params=pltpu.CompilerParams(
            dimension_semantics=("arbitrary", "arbitrary"),
            vmem_limit_bytes=_vmem_limit(vmem),
        ),
    )(W_op, Y_pad)


# --------------------------------------------------------------------------
# Host-side graph construction helpers (mirror the scipy reference).
# --------------------------------------------------------------------------
def _build_affinity(vals, inds, N, k):
    D3 = np.asarray(vals).astype(np.float32)[:, 1:] ** 3
    I = np.asarray(inds)[:, 1:]
    W = np.zeros((N, N), dtype=np.float32)
    rows = np.tile(np.arange(N)[:, None], (1, k))
    np.add.at(W, (rows.ravel(), I.ravel()), D3.ravel())
    W = W + W.T
    np.fill_diagonal(W, 0.0)
    return W


def _normalize_graph(W, alpha):
    # W' = alpha * D^{-1/2} W D^{-1/2}, folded once on the host.
    S = W.sum(axis=1)
    S[S == 0] = 1.0
    d = (1.0 / np.sqrt(S)).astype(np.float32)
    return (float(alpha) * d[:, None] * W * d[None, :]).astype(np.float32)


def _quantize_rows_int8(Wp):
    row_max = np.max(np.abs(Wp), axis=1)
    scale = np.where(row_max > 0.0, row_max / 127.0, 1.0).astype(np.float32)
    q = np.clip(np.rint(Wp / scale[:, None]), -127, 127).astype(np.int8)
    return q, scale.reshape(-1, 1)


# --------------------------------------------------------------------------
# Module wrapper reproducing GraphLabelPropagation.forward semantics.
# --------------------------------------------------------------------------
class GraphLabelPropagation:
    def __init__(self, k=50, max_iter=20, alpha=0.99, threshold=0.4):
        self.k = k
        self.max_iter = max_iter
        self.alpha = alpha
        self.threshold = threshold

    def forward(self, X, labels, labels_mask, idxs):
        labeled_idx = idxs[labels_mask]
        if not hasattr(self, "num_classes"):
            self.num_classes = len(np.unique(labels))
            self.class_weights = np.ones(self.num_classes)

        N = X.shape[0]
        C = self.num_classes
        CP = ((C + 127) // 128) * 128  # keep classes at exactly one 128-lane tile

        # --- kNN graph (faiss GpuIndexFlatIP replaced by exact dense top-k) ---
        G = cosine_similarity_matrix(jnp.asarray(X, dtype=jnp.float32))
        vals, inds = lax.top_k(G, self.k + 1)  # descending; first hit is self
        vals = np.asarray(jax.block_until_ready(vals))
        inds = np.asarray(inds)
        W = _build_affinity(vals, inds, N, self.k)
        Wp = _normalize_graph(W, self.alpha)

        # --- choose resident vs. streaming LP by VMEM capacity (no clipping) ---
        use_int8 = _has_int8_mxu()
        w_elem = 1 if use_int8 else 2
        cap = _vmem_capacity_bytes()
        NP = ((N + 127) // 128) * 128
        resident_need = NP * NP * w_elem + 16 * NP * CP * 4 + 8 * _MIB
        streaming = resident_need > 0.8 * cap
        block_rows = 512
        if streaming:
            use_int8 = False
            NP = ((N + block_rows - 1) // block_rows) * block_rows
            state = 9 * NP * CP * 4 + 8 * _MIB
            while block_rows > 128 and 2 * block_rows * NP * 2 + state > 0.8 * cap:
                block_rows //= 2
                NP = ((N + block_rows - 1) // block_rows) * block_rows

        # padded W' and per-class seed vectors
        Wp_pad = np.zeros((NP, NP), dtype=np.float32)
        Wp_pad[:N, :N] = Wp
        Y = np.zeros((NP, CP), dtype=np.float32)
        for i in range(C):
            cur_idx = labeled_idx[np.where(labels[labeled_idx] == i)]
            if cur_idx.shape[0] > 0:
                Y[cur_idx, i] = 1.0 / cur_idx.shape[0]
        Y_dev = jnp.asarray(Y)

        # --- label propagation (Pallas kernel 2) ---
        if streaming:
            pseudo_dev = label_propagate(
                jnp.asarray(Wp_pad, dtype=jnp.bfloat16), Y_dev, None,
                self.max_iter, C, use_int8=False, streaming=True,
                block_rows=block_rows)
        elif use_int8:
            qW, row_scale = _quantize_rows_int8(Wp_pad)
            try:
                pseudo_dev = label_propagate(
                    jnp.asarray(qW), Y_dev, jnp.asarray(row_scale),
                    self.max_iter, C, use_int8=True, streaming=False)
                jax.block_until_ready(pseudo_dev)
            except Exception as e:  # chip / toolchain without int8 lowering
                warnings.warn(
                    f"int8 LP path unavailable ({type(e).__name__}); using bf16")
                pseudo_dev = label_propagate(
                    jnp.asarray(Wp_pad, dtype=jnp.bfloat16), Y_dev,
                    jnp.ones((NP, 1), jnp.float32),
                    self.max_iter, C, use_int8=False, streaming=False)
        else:
            pseudo_dev = label_propagate(
                jnp.asarray(Wp_pad, dtype=jnp.bfloat16), Y_dev,
                jnp.ones((NP, 1), jnp.float32),
                self.max_iter, C, use_int8=False, streaming=False)

        pseudo = np.asarray(jax.block_until_ready(pseudo_dev))[:N, :C]

        # --- host-side bookkeeping, same order as the reference ---
        max_probs = pseudo.max(axis=1)
        mask = (max_probs >= self.threshold).astype(np.float32)
        p_labels = np.argmax(pseudo, axis=1)
        weights = mask
        correct_idx = (p_labels == labels).astype(int)
        acc = correct_idx.mean()
        p_labels[labeled_idx] = labels[labeled_idx]
        weights[np.isnan(weights)] = 0.0
        self.p_weights = weights
        self.p_labels = p_labels
        self.masks = self.p_weights.copy()
        for i in range(self.num_classes):
            cur_idx = np.where(np.asarray(self.p_labels) == i)[0]
            if cur_idx.size > 0:
                self.class_weights[i] = (
                    float(labels.shape[0]) / self.num_classes / cur_idx.size
                )
        return (self.p_labels, acc, self.masks)


if __name__ == "__main__":
    key = jax.random.PRNGKey(0)
    N, d, C, k = 64, 32, 4, 8

    X = np.asarray(jax.random.normal(key, (N, d), dtype=jnp.float32))
    labels = (np.arange(N) % C).astype(np.int64)  # all classes present
    labels_mask = np.arange(N) < N // 2           # first half labeled
    idxs = np.arange(N)

    module = GraphLabelPropagation(k=k, max_iter=20, alpha=0.99, threshold=0.4)
    p_labels, acc, masks = module.forward(X, labels, labels_mask, idxs)
    jax.block_until_ready(jnp.asarray(masks))
    assert p_labels.shape == (N,)
    assert masks.shape == (N,)
    assert np.isfinite(acc)
    assert np.all(np.isfinite(masks))

    # Consistency check: streaming (HBM re-streamed W, 2 row blocks) vs resident
    # bf16 CG on a small synthetic graph — exercises the large-N path.
    NP, CP, C2 = 128, 128, 4
    rng = np.random.default_rng(0)
    A = rng.random((NP, NP), dtype=np.float32)
    Wt = A + A.T
    np.fill_diagonal(Wt, 0.0)
    Wp_t = _normalize_graph(Wt, 0.99)
    Yt = np.zeros((NP, CP), dtype=np.float32)
    for c in range(C2):
        Yt[rng.integers(0, NP, size=4), c] = 0.25
    Wp_bf16 = jnp.asarray(Wp_t, dtype=jnp.bfloat16)
    Yt_dev = jnp.asarray(Yt)
    ones = jnp.ones((NP, 1), jnp.float32)
    out_res = label_propagate(Wp_bf16, Yt_dev, ones, 20, C2,
                              use_int8=False, streaming=False)
    out_str = label_propagate(Wp_bf16, Yt_dev, None, 20, C2,
                              use_int8=False, streaming=True, block_rows=64)
    out_res = np.asarray(jax.block_until_ready(out_res))
    out_str = np.asarray(jax.block_until_ready(out_str))
    assert np.all(np.isfinite(out_res)) and np.all(np.isfinite(out_str))
    assert np.max(np.abs(out_res[:, :C2] - out_str[:, :C2])) < 5e-2

    print("KERNEL_OK")
</pallas_src>

<mosaic_0001>
module attributes {stable_mosaic.version = 11 : i64} {
  func.func @_rownorm_kernel(%arg0: i32, %arg1: memref<64x32xf32, #tpu.memory_space<vmem>>, %arg2: memref<64x32xbf16, #tpu.memory_space<vmem>>) attributes {dimension_semantics = [#tpu.dimension_semantics<parallel>], iteration_bounds = array<i64: 1>, scalar_prefetch = 0 : i64, scratch_operands = 0 : i64, tpu.core_type = #tpu.core_type<tc>, window_params = [{transform_indices = @transform_0, window_bounds = array<i64: 64, 32>}, {transform_indices = @transform_1, window_bounds = array<i64: 64, 32>}]} {
    %c0 = arith.constant 0 : index
    %c0_0 = arith.constant 0 : index
    %0 = vector.load %arg1[%c0, %c0_0] : memref<64x32xf32, #tpu.memory_space<vmem>>, vector<64x32xf32>
    %1 = arith.mulf %0, %0 : vector<64x32xf32>
    %cst = arith.constant dense<0.000000e+00> : vector<64xf32>
    %2 = vector.multi_reduction <add>, %1, %cst [1] : vector<64x32xf32> to vector<64xf32>
    %3 = vector.shape_cast %2 : vector<64xf32> to vector<64x1xf32>
    %cst_1 = arith.constant 1.000000e-24 : f32
    %4 = vector.broadcast %cst_1 : f32 to vector<64x1xf32>
    %5 = arith.maximumf %3, %4 : vector<64x1xf32>
    %6 = math.rsqrt %5 : vector<64x1xf32>
    %7 = vector.broadcast %6 : vector<64x1xf32> to vector<64x32xf32>
    %8 = arith.mulf %0, %7 : vector<64x32xf32>
    %9 = arith.truncf %8 : vector<64x32xf32> to vector<64x32xbf16>
    %c0_2 = arith.constant 0 : index
    %c0_3 = arith.constant 0 : index
    %10 = vector.load %arg2[%c0_2, %c0_3] : memref<64x32xbf16, #tpu.memory_space<vmem>>, vector<64x32xbf16>
    tpu.vector_store %arg2[%c0_2, %c0_3], %9 {strides = array<i32>} : memref<64x32xbf16, #tpu.memory_space<vmem>>, vector<64x32xbf16>,
    return
  }
  func.func @transform_0(%arg0: i32) -> (i32, i32) {
    %c0_i32 = arith.constant 0 : i32
    %c0_i32_0 = arith.constant 0 : i32
    return %arg0, %c0_i32 : i32, i32
  }
  func.func @transform_1(%arg0: i32) -> (i32, i32) {
    %c0_i32 = arith.constant 0 : i32
    %c0_i32_0 = arith.constant 0 : i32
    return %arg0, %c0_i32 : i32, i32
  }
}

</mosaic_0001>

<llo_original>
// kernel: tpu_custom_call.1
$region0: #{tpu_custom_call.1}
  #allocation0 [shape = 'u32[]', space=smem, size = 0x4, offset = 0x4, fixed_abs, tag = 'smem constant byte address 0x4 - core index']
  #allocation1 [shape = 'u32[72,128]{1,0:T(1,128)}', space=vmem, size = 0x9000, scoped, tag = 'internal scratch']
  %s0 = inlined_call_operand.vmem [shape: f32[64,32], index: 0, kind: input, shape index: {}]
  %s1 = inlined_call_operand.vmem [shape: bf16[64,32], index: 1, kind: output, shape index: {}]
  %s2 = sld [smem:[#allocation0]]
  $region14: #{tpu_custom_call.1} parent=0
    _
  %s4 = ssub.s32 1, %s2
  %s5 = scalar_select 0, %s4, %s2
  // Predicated region
  $region2: #{tpu_custom_call.1} parent=0 // pred_check
    _
  $region3: #{tpu_custom_call.1} parent=0 // pred_check_branch
    %7 = sbr.rel (0) target = $region5
  $region4: #{tpu_custom_call.1} parent=0 // pred_region
    _
  $region5: #{tpu_custom_call.1} parent=0 // pred_fallthru
    _
  %v8 = vld [vmem:[%s0] sm:$0xff]
  %v9 = vld [vmem:[%s0 + $0x8] sm:$0xff]
  %v10 = vld [vmem:[%s0 + $0x10] sm:$0xff]
  %v11 = vld [vmem:[%s0 + $0x18] sm:$0xff]
  %v12 = vld [vmem:[%s0 + $0x20] sm:$0xff]
  %v13 = vld [vmem:[%s0 + $0x28] sm:$0xff]
  %v14 = vld [vmem:[%s0 + $0x30] sm:$0xff]
  %v15 = vld [vmem:[%s0 + $0x38] sm:$0xff]
  %v16 = vmul.f32 %v8, %v8
  %v17 = vmul.f32 %v9, %v9
  %v18 = vmul.f32 %v10, %v10
  %v19 = vmul.f32 %v11, %v11
  %v20 = vmul.f32 %v12, %v12
  %v21 = vmul.f32 %v13, %v13
  %v22 = vmul.f32 %v14, %v14
  %v23 = vmul.f32 %v15, %v15
  %vm24 = vcmask 261120
  %v25 = vsel %vm24, %v16, 0.0
  %26 = vadd.xlane.f32.xlu0 %v25
  %v27 = vpop.xlane.xlu0 %26
  %v28 = vsel %vm24, %v17, 0.0
  %29 = vadd.xlane.f32.xlu0 %v28
  %v30 = vpop.xlane.xlu0 %29
  %v31 = vsel %vm24, %v18, 0.0
  %32 = vadd.xlane.f32.xlu0 %v31
  %v33 = vpop.xlane.xlu0 %32
  %v34 = vsel %vm24, %v19, 0.0
  %35 = vadd.xlane.f32.xlu0 %v34
  %v36 = vpop.xlane.xlu0 %35
  %v37 = vsel %vm24, %v20, 0.0
  %38 = vadd.xlane.f32.xlu0 %v37
  %v39 = vpop.xlane.xlu0 %38
  %v40 = vsel %vm24, %v21, 0.0
  %41 = vadd.xlane.f32.xlu0 %v40
  %v42 = vpop.xlane.xlu0 %41
  %v43 = vsel %vm24, %v22, 0.0
  %44 = vadd.xlane.f32.xlu0 %v43
  %v45 = vpop.xlane.xlu0 %44
  %v46 = vsel %vm24, %v23, 0.0
  %47 = vadd.xlane.f32.xlu0 %v46
  %v48 = vpop.xlane.xlu0 %47
  %v49 = vmax.f32 %v27, 1e-24
  %v50 = vmax.f32 %v30, 1e-24
  %v51 = vmax.f32 %v33, 1e-24
  %v52 = vmax.f32 %v36, 1e-24
  %v53 = vmax.f32 %v39, 1e-24
  %v54 = vmax.f32 %v42, 1e-24
  %v55 = vmax.f32 %v45, 1e-24
  %v56 = vmax.f32 %v48, 1e-24
  %v57 = vrsqrt.pop %v49
  %v58 = vmul.f32 %v57, %v49
  %v59 = vmul.f32 %v58, %v57
  %v60 = vmul.f32 0.5, %v59
  %v61 = vsub.f32 1.5, %v60
  %v62 = vmul.f32 %v57, %v61
  %vm63 = vweird.f32 %v49
  %vm64 = vweird.f32 %v57
  %vm65 = vmor %vm63, %vm64
  %v66 = vsel %vm65, %v57, %v62
  %v67 = vrsqrt.pop %v50
  %v68 = vmul.f32 %v67, %v50
  %v69 = vmul.f32 %v68, %v67
  %v70 = vmul.f32 0.5, %v69
  %v71 = vsub.f32 1.5, %v70
  %v72 = vmul.f32 %v67, %v71
  %vm73 = vweird.f32 %v50
  %vm74 = vweird.f32 %v67
  %vm75 = vmor %vm73, %vm74
  %v76 = vsel %vm75, %v67, %v72
  %v77 = vrsqrt.pop %v51
  %v78 = vmul.f32 %v77, %v51
  %v79 = vmul.f32 %v78, %v77
  %v80 = vmul.f32 0.5, %v79
  %v81 = vsub.f32 1.5, %v80
  %v82 = vmul.f32 %v77, %v81
  %vm83 = vweird.f32 %v51
  %vm84 = vweird.f32 %v77
  %vm85 = vmor %vm83, %vm84
  %v86 = vsel %vm85, %v77, %v82
  %v87 = vrsqrt.pop %v52
  %v88 = vmul.f32 %v87, %v52
  %v89 = vmul.f32 %v88, %v87
  %v90 = vmul.f32 0.5, %v89
  %v91 = vsub.f32 1.5, %v90
  %v92 = vmul.f32 %v87, %v91
  %vm93 = vweird.f32 %v52
  %vm94 = vweird.f32 %v87
  %vm95 = vmor %vm93, %vm94
  %v96 = vsel %vm95, %v87, %v92
  %v97 = vrsqrt.pop %v53
  %v98 = vmul.f32 %v97, %v53
  %v99 = vmul.f32 %v98, %v97
  %v100 = vmul.f32 0.5, %v99
  %v101 = vsub.f32 1.5, %v100
  %v102 = vmul.f32 %v97, %v101
  %vm103 = vweird.f32 %v53
  %vm104 = vweird.f32 %v97
  %vm105 = vmor %vm103, %vm104
  %v106 = vsel %vm105, %v97, %v102
  %v107 = vrsqrt.pop %v54
  %v108 = vmul.f32 %v107, %v54
  %v109 = vmul.f32 %v108, %v107
  %v110 = vmul.f32 0.5, %v109
  %v111 = vsub.f32 1.5, %v110
  %v112 = vmul.f32 %v107, %v111
  %vm113 = vweird.f32 %v54
  %vm114 = vweird.f32 %v107
  %vm115 = vmor %vm113, %vm114
  %v116 = vsel %vm115, %v107, %v112
  %v117 = vrsqrt.pop %v55
  %v118 = vmul.f32 %v117, %v55
  %v119 = vmul.f32 %v118, %v117
  %v120 = vmul.f32 0.5, %v119
  %v121 = vsub.f32 1.5, %v120
  %v122 = vmul.f32 %v117, %v121
  %vm123 = vweird.f32 %v55
  %vm124 = vweird.f32 %v117
  %vm125 = vmor %vm123, %vm124
  %v126 = vsel %vm125, %v117, %v122
  %v127 = vrsqrt.pop %v56
  %v128 = vmul.f32 %v127, %v56
  %v129 = vmul.f32 %v128, %v127
  %v130 = vmul.f32 0.5, %v129
  %v131 = vsub.f32 1.5, %v130
  %v132 = vmul.f32 %v127, %v131
  %vm133 = vweird.f32 %v56
  %vm134 = vweird.f32 %v127
  %vm135 = vmor %vm133, %vm134
  %v136 = vsel %vm135, %v127, %v132
  %v137 = vmul.f32 %v8, %v66
  %v138 = vmul.f32 %v9, %v76
  %v139 = vmul.f32 %v10, %v86
  %v140 = vmul.f32 %v11, %v96
  %v141 = vmul.f32 %v12, %v106
  %v142 = vmul.f32 %v13, %v116
  %v143 = vmul.f32 %v14, %v126
  %v144 = vmul.f32 %v15, %v136
  %v145 = vpack.c.bf16 %v137, %v137
  %v146 = vpack.c.bf16 %v138, %v138
  %v147 = vpack.c.bf16 %v139, %v139
  %v148 = vpack.c.bf16 %v140, %v140
  %v149 = vpack.c.bf16 %v141, %v141
  %v150 = vpack.c.bf16 %v142, %v142
  %v151 = vpack.c.bf16 %v143, %v143
  %v152 = vpack.c.bf16 %v144, %v144
  %vm153 = vcmask 257024
  %154 = vst.msk [vmem:[%s1] sm:$0xf] %vm153, %v145
  %155 = vst.msk [vmem:[%s1 + $0x4] sm:$0xf] %vm153, %v146
  %156 = vst.msk [vmem:[%s1 + $0x8] sm:$0xf] %vm153, %v147
  %157 = vst.msk [vmem:[%s1 + $0xc] sm:$0xf] %vm153, %v148
  %158 = vst.msk [vmem:[%s1 + $0x10] sm:$0xf] %vm153, %v149
  %159 = vst.msk [vmem:[%s1 + $0x14] sm:$0xf] %vm153, %v150
  %160 = vst.msk [vmem:[%s1 + $0x18] sm:$0xf] %vm153, %v151
  %161 = vst.msk [vmem:[%s1 + $0x1c] sm:$0xf] %vm153, %v152
  // Predicated region
  $region6: #{tpu_custom_call.1} parent=0 // pred_check
    _
  $region7: #{tpu_custom_call.1} parent=0 // pred_check_branch
    %163 = sbr.rel (0) target = $region9
  $region8: #{tpu_custom_call.1} parent=0 // pred_region
    _
  $region9: #{tpu_custom_call.1} parent=0 // pred_fallthru
    _
  // Predicated region
  $region10: #{tpu_custom_call.1} parent=0 // pred_check
    _
  $region11: #{tpu_custom_call.1} parent=0 // pred_check_branch
    %165 = sbr.rel (0) target = $region13
  $region12: #{tpu_custom_call.1} parent=0 // pred_region
    _
  $region13: #{tpu_custom_call.1} parent=0 // pred_fallthru
    _

</llo_original>
